<compile_context>
chip_gen: v6e
topology: v6e:2x2x1
jax: 0.10.0
libtpu: 0.0.40
codegen_flags: <defaults>
</compile_context>

<pallas_src>
import functools

import jax
import jax.numpy as jnp
import numpy as np
from jax.experimental import pallas as pl
from jax.experimental.pallas import tpu as pltpu


def _round_up(x, m):
    return ((x + m - 1) // m) * m


# ----------------------------------------------------------------------------
# Kernel
# ----------------------------------------------------------------------------
def _qnetwork_kernel(state_ref,
                     wf_ref,                               # fused [fc1 | l1], bias folded in
                     w2_ref, b2_ref, w3_ref, b3_ref,
                     l2w_ref, l2b_ref, l3w_ref, l3b_ref,
                     out_ref,
                     *, h1_pad, v_lane):
    # Activations stay f32 on the VPU/EUP; cast to bf16 only at MXU inputs.
    s = state_ref[...].astype(jnp.bfloat16)                           # [bb, S_pad]

    # Fused first layer: actor fc1 and critic l1 share the same input.  The
    # bias is folded into wf via the constant-1 state lane (no bias add here).
    z = jnp.dot(s, wf_ref[...], preferred_element_type=jnp.float32)   # [bb, 2*h1_pad]
    h = jnp.maximum(z[:, :h1_pad], 0.0)                               # actor: relu(fc1)
    vh = z[:, h1_pad:]                                                # critic: l1 (no relu)

    # Actor head: relu(fc2) -> relu(fc3) -> tanh.
    h = jnp.maximum(
        jnp.dot(h.astype(jnp.bfloat16), w2_ref[...],
                preferred_element_type=jnp.float32) + b2_ref[...], 0.0)
    x = jnp.maximum(
        jnp.dot(h.astype(jnp.bfloat16), w3_ref[...],
                preferred_element_type=jnp.float32) + b3_ref[...], 0.0)
    mean = jnp.tanh(x)                                                # [bb, A_pad] f32

    # Critic head: l2 on the MXU; the 1-wide l3 as a broadcast-multiply + lane
    # reduction (VPU/XLU) that overlaps with the actor chain's MXU work.
    vh = jnp.dot(vh.astype(jnp.bfloat16), l2w_ref[...],
                 preferred_element_type=jnp.float32) + l2b_ref[...]
    vs = jnp.sum(vh * l3w_ref[...], axis=-1, keepdims=True) + l3b_ref[...]   # [bb, 1]

    # Pack the critic value into a dead padded lane of the mean tile: one
    # lane-dense, unmasked bf16 store and no second output DMA stream.
    col = jax.lax.broadcasted_iota(jnp.int32, mean.shape, 1)
    out_ref[...] = jnp.where(col == v_lane, vs, mean).astype(out_ref.dtype)


# ----------------------------------------------------------------------------
# Parameter padding / fusion (done once, outside the hot path)
# ----------------------------------------------------------------------------
def _pad_and_fuse_params(p, s_pad, h1_pad, h2_pad, a_pad):
    def pad2(a, rows, cols, dtype=jnp.float32):
        a = a.astype(dtype)
        return jnp.pad(a, ((0, rows - a.shape[0]), (0, cols - a.shape[1])))

    # Fused first layer [fc1 | l1] with the bias appended as row `S` (the
    # wrapper sets padded-state lane S to 1.0).  Matmul weights are bf16;
    # biases and the 1-wide critic weight stay f32 (they feed the VPU).
    w1b = jnp.concatenate([p["w1"], p["b1"]], axis=0)       # [S+1, H1]
    l1wb = jnp.concatenate([p["l1w"], p["l1b"]], axis=0)    # [S+1, H1]
    wf = jnp.concatenate([pad2(w1b, s_pad, h1_pad, jnp.bfloat16),
                          pad2(l1wb, s_pad, h1_pad, jnp.bfloat16)], axis=1)
    return dict(
        wf=wf,                                                        # [s_pad, 2*h1_pad] bf16
        w2=pad2(p["w2"], h1_pad, h2_pad, jnp.bfloat16),
        b2=pad2(p["b2"], 1, h2_pad),
        w3=pad2(p["w3"], h2_pad, a_pad, jnp.bfloat16),
        b3=pad2(p["b3"], 1, a_pad),
        l2w=pad2(p["l2w"], h1_pad, h2_pad, jnp.bfloat16),
        l2b=pad2(p["l2b"], 1, h2_pad),
        l3w=pad2(p["l3w"].T, 1, h2_pad),      # f32 row vector for the VPU reduce
        l3b=p["l3b"].astype(jnp.float32),     # [1, 1]
    )


# ----------------------------------------------------------------------------
# Wrapper
# ----------------------------------------------------------------------------
def qnetwork_forward(state, params, *, block_b=512):
    """Forward pass of QNetwork.

    Returns (mean, scale, v) where dist = Normal(mean, scale) and v is the
    critic value — semantically equivalent to the torch module's (dist, v).
    """
    B, S = state.shape
    H1 = params["w1"].shape[1]
    H2 = params["w2"].shape[1]
    A = params["w3"].shape[1]

    # Lane-aligned padded dims.  S gets +1 for the folded-bias lane; A gets +1
    # so there is always at least one dead output lane to pack v into.
    S_pad = _round_up(S + 1, 128)
    H1_pad = _round_up(H1, 128)
    H2_pad = _round_up(H2, 128)
    A_pad = _round_up(A + 1, 128)
    v_lane = A_pad - 1                       # dead output lane carrying the critic value

    # Balanced batch blocking: >=2 grid steps when the batch is big enough
    # (keeps v7x's second TensorCore busy) and no step that is mostly padding.
    # bb is a multiple of 16 so the bf16 output block is sublane-pack friendly.
    max_steps = max(B // 16, 1)
    steps = min(max(pl.cdiv(B, block_b), 2), max_steps)
    bb = _round_up(pl.cdiv(B, steps), 16)
    B_pad = steps * bb

    p = _pad_and_fuse_params(params, S_pad, H1_pad, H2_pad, A_pad)

    state_p = jnp.pad(state.astype(jnp.float32),
                      ((0, B_pad - B), (0, S_pad - S)))
    state_p = state_p.at[:, S].set(1.0)      # constant-1 lane feeds the folded bias row

    weight_args = (p["wf"], p["w2"], p["b2"], p["w3"], p["b3"],
                   p["l2w"], p["l2b"], p["l3w"], p["l3b"])
    # Weights: full block, constant index_map -> VMEM-resident across grid steps.
    weight_specs = [pl.BlockSpec(w.shape, lambda i: (0, 0)) for w in weight_args]

    kernel = functools.partial(_qnetwork_kernel, h1_pad=H1_pad, v_lane=v_lane)

    out_p = pl.pallas_call(
        kernel,
        out_shape=jax.ShapeDtypeStruct((B_pad, A_pad), jnp.bfloat16),
        grid=(steps,),
        in_specs=[pl.BlockSpec((bb, S_pad), lambda i: (i, 0))] + weight_specs,
        out_specs=pl.BlockSpec((bb, A_pad), lambda i: (i, 0)),
        compiler_params=pltpu.CompilerParams(
            dimension_semantics=("parallel",),     # megacore split on v7x
            vmem_limit_bytes=32 << 20,
        ),
    )(state_p, *weight_args)

    mean = out_p[:B, :A].astype(jnp.float32)
    v = out_p[:B, v_lane:v_lane + 1].astype(jnp.float32)

    # scale = softplus(exp(std)) is state-independent, so it is hoisted out of
    # the kernel entirely (it only changes when `std` changes).
    scale = jnp.broadcast_to(jax.nn.softplus(jnp.exp(params["std"])), (B, A))
    return mean, scale, v


# ----------------------------------------------------------------------------
# Synthetic params + pure-JAX reference
# ----------------------------------------------------------------------------
def make_params(key, state_size, action_size, fc1_units, fc2_units):
    """Deterministic synthetic parameter init (uniform, torch-Linear-like scale)."""
    def linear(k, fan_in, fan_out):
        kw, kb = jax.random.split(k)
        bound = 1.0 / np.sqrt(fan_in)
        w = jax.random.uniform(kw, (fan_in, fan_out), jnp.float32, -bound, bound)
        b = jax.random.uniform(kb, (1, fan_out), jnp.float32, -bound, bound)
        return w, b

    ks = jax.random.split(key, 6)
    w1, b1 = linear(ks[0], state_size, fc1_units)
    w2, b2 = linear(ks[1], fc1_units, fc2_units)
    w3, b3 = linear(ks[2], fc2_units, action_size)
    l1w, l1b = linear(ks[3], state_size, fc1_units)
    l2w, l2b = linear(ks[4], fc1_units, fc2_units)
    l3w, l3b = linear(ks[5], fc2_units, 1)
    std = jnp.ones((1, action_size), jnp.float32)   # nn.Parameter(torch.ones(action_size))
    return dict(w1=w1, b1=b1, w2=w2, b2=b2, w3=w3, b3=b3,
                l1w=l1w, l1b=l1b, l2w=l2w, l2b=l2b, l3w=l3w, l3b=l3b,
                std=std)


def reference_forward(state, p):
    """Pure-JAX f32 reference mirroring the torch forward."""
    dot = functools.partial(jnp.dot, precision=jax.lax.Precision.HIGHEST)
    x = jax.nn.relu(dot(state, p["w1"]) + p["b1"])
    x = jax.nn.relu(dot(x, p["w2"]) + p["b2"])
    x = jax.nn.relu(dot(x, p["w3"]) + p["b3"])
    mean = jnp.tanh(x)
    scale = jnp.broadcast_to(jax.nn.softplus(jnp.exp(p["std"])), mean.shape)
    v = dot(state, p["l1w"]) + p["l1b"]
    v = dot(v, p["l2w"]) + p["l2b"]
    v = dot(v, p["l3w"]) + p["l3b"]
    return mean, scale, v


if __name__ == "__main__":
    # Small shapes consistent with the module defaults (state=105, action=132,
    # hidden=202), batch=2.  The wrapper pads batch/features internally.
    BATCH, STATE_SIZE, ACTION_SIZE = 2, 105, 132
    FC1 = FC2 = 202

    key = jax.random.PRNGKey(0)
    k_state, k_params = jax.random.split(key)

    state = jax.random.normal(k_state, (BATCH, STATE_SIZE), jnp.float32)
    params = make_params(k_params, STATE_SIZE, ACTION_SIZE, FC1, FC2)

    mean, scale, v = qnetwork_forward(state, params)
    jax.block_until_ready((mean, scale, v))

    mean_r, scale_r, v_r = reference_forward(state, params)
    assert mean.shape == (BATCH, ACTION_SIZE)
    assert scale.shape == (BATCH, ACTION_SIZE)
    assert v.shape == (BATCH, 1)
    # The kernel runs its matmuls with bf16 operands (f32 accumulation) and
    # stores bf16 outputs, so compare against the f32 reference with a
    # bf16-appropriate tolerance.  scale is computed in f32 outside the kernel.
    np.testing.assert_allclose(np.asarray(scale), np.asarray(scale_r), rtol=1e-6, atol=1e-6)
    np.testing.assert_allclose(np.asarray(mean), np.asarray(mean_r), rtol=5e-2, atol=5e-2)
    np.testing.assert_allclose(np.asarray(v), np.asarray(v_r), rtol=5e-2, atol=5e-2)

    print("KERNEL_OK")
</pallas_src>

<mosaic_0001>
module attributes {stable_mosaic.version = 11 : i64} {
  func.func @_qnetwork_kernel(%arg0: i32, %arg1: memref<16x128xf32, #tpu.memory_space<vmem>>, %arg2: memref<128x512xbf16, #tpu.memory_space<vmem>>, %arg3: memref<256x256xbf16, #tpu.memory_space<vmem>>, %arg4: memref<1x256xf32, #tpu.memory_space<vmem>>, %arg5: memref<256x256xbf16, #tpu.memory_space<vmem>>, %arg6: memref<1x256xf32, #tpu.memory_space<vmem>>, %arg7: memref<256x256xbf16, #tpu.memory_space<vmem>>, %arg8: memref<1x256xf32, #tpu.memory_space<vmem>>, %arg9: memref<1x256xf32, #tpu.memory_space<vmem>>, %arg10: memref<1x1xf32, #tpu.memory_space<vmem>>, %arg11: memref<16x256xbf16, #tpu.memory_space<vmem>>) attributes {dimension_semantics = [#tpu.dimension_semantics<parallel>], iteration_bounds = array<i64: 1>, scalar_prefetch = 0 : i64, scratch_operands = 0 : i64, tpu.core_type = #tpu.core_type<tc>, window_params = [{transform_indices = @transform_0, window_bounds = array<i64: 16, 128>}, {pipeline_mode = #tpu.pipeline_mode<synchronous>, transform_indices = @transform_1, window_bounds = array<i64: 128, 512>}, {pipeline_mode = #tpu.pipeline_mode<synchronous>, transform_indices = @transform_2, window_bounds = array<i64: 256, 256>}, {pipeline_mode = #tpu.pipeline_mode<synchronous>, transform_indices = @transform_3, window_bounds = array<i64: 1, 256>}, {pipeline_mode = #tpu.pipeline_mode<synchronous>, transform_indices = @transform_4, window_bounds = array<i64: 256, 256>}, {pipeline_mode = #tpu.pipeline_mode<synchronous>, transform_indices = @transform_5, window_bounds = array<i64: 1, 256>}, {pipeline_mode = #tpu.pipeline_mode<synchronous>, transform_indices = @transform_6, window_bounds = array<i64: 256, 256>}, {pipeline_mode = #tpu.pipeline_mode<synchronous>, transform_indices = @transform_7, window_bounds = array<i64: 1, 256>}, {pipeline_mode = #tpu.pipeline_mode<synchronous>, transform_indices = @transform_8, window_bounds = array<i64: 1, 256>}, {pipeline_mode = #tpu.pipeline_mode<synchronous>, transform_indices = @transform_9, window_bounds = array<i64: 1, 1>}, {transform_indices = @transform_10, window_bounds = array<i64: 16, 256>}]} {
    %c0 = arith.constant 0 : index
    %c0_0 = arith.constant 0 : index
    %0 = vector.load %arg1[%c0, %c0_0] : memref<16x128xf32, #tpu.memory_space<vmem>>, vector<16x128xf32>
    %1 = arith.truncf %0 : vector<16x128xf32> to vector<16x128xbf16>
    %c0_1 = arith.constant 0 : index
    %c0_2 = arith.constant 0 : index
    %2 = vector.load %arg2[%c0_1, %c0_2] : memref<128x512xbf16, #tpu.memory_space<vmem>>, vector<128x512xbf16>
    %cst = arith.constant dense<0.000000e+00> : vector<16x512xf32>
    %3 = tpu.matmul %1, %2, %cst {dimension_numbers = #tpu.dot_dimension_numbers<[1], [0], [0], [1], [0, 0, 1, 1], [], []>} : vector<16x128xbf16>, vector<128x512xbf16>, vector<16x512xf32> -> vector<16x512xf32>
    %4 = vector.extract_strided_slice %3 {offsets = [0, 0], sizes = [16, 256], strides = [1, 1]} : vector<16x512xf32> to vector<16x256xf32>
    %cst_3 = arith.constant 0.000000e+00 : f32
    %5 = vector.broadcast %cst_3 : f32 to vector<16x256xf32>
    %6 = arith.maximumf %4, %5 : vector<16x256xf32>
    %7 = vector.extract_strided_slice %3 {offsets = [0, 256], sizes = [16, 256], strides = [1, 1]} : vector<16x512xf32> to vector<16x256xf32>
    %8 = arith.truncf %6 : vector<16x256xf32> to vector<16x256xbf16>
    %c0_4 = arith.constant 0 : index
    %c0_5 = arith.constant 0 : index
    %9 = vector.load %arg3[%c0_4, %c0_5] : memref<256x256xbf16, #tpu.memory_space<vmem>>, vector<256x256xbf16>
    %cst_6 = arith.constant dense<0.000000e+00> : vector<16x256xf32>
    %10 = tpu.matmul %8, %9, %cst_6 {dimension_numbers = #tpu.dot_dimension_numbers<[1], [0], [0], [1], [0, 0, 1, 1], [], []>} : vector<16x256xbf16>, vector<256x256xbf16>, vector<16x256xf32> -> vector<16x256xf32>
    %c0_7 = arith.constant 0 : index
    %c0_8 = arith.constant 0 : index
    %11 = vector.load %arg4[%c0_7, %c0_8] : memref<1x256xf32, #tpu.memory_space<vmem>>, vector<1x256xf32>
    %12 = vector.broadcast %11 : vector<1x256xf32> to vector<16x256xf32>
    %13 = arith.addf %10, %12 : vector<16x256xf32>
    %cst_9 = arith.constant 0.000000e+00 : f32
    %14 = vector.broadcast %cst_9 : f32 to vector<16x256xf32>
    %15 = arith.maximumf %13, %14 : vector<16x256xf32>
    %16 = arith.truncf %15 : vector<16x256xf32> to vector<16x256xbf16>
    %c0_10 = arith.constant 0 : index
    %c0_11 = arith.constant 0 : index
    %17 = vector.load %arg5[%c0_10, %c0_11] : memref<256x256xbf16, #tpu.memory_space<vmem>>, vector<256x256xbf16>
    %cst_12 = arith.constant dense<0.000000e+00> : vector<16x256xf32>
    %18 = tpu.matmul %16, %17, %cst_12 {dimension_numbers = #tpu.dot_dimension_numbers<[1], [0], [0], [1], [0, 0, 1, 1], [], []>} : vector<16x256xbf16>, vector<256x256xbf16>, vector<16x256xf32> -> vector<16x256xf32>
    %c0_13 = arith.constant 0 : index
    %c0_14 = arith.constant 0 : index
    %19 = vector.load %arg6[%c0_13, %c0_14] : memref<1x256xf32, #tpu.memory_space<vmem>>, vector<1x256xf32>
    %20 = vector.broadcast %19 : vector<1x256xf32> to vector<16x256xf32>
    %21 = arith.addf %18, %20 : vector<16x256xf32>
    %cst_15 = arith.constant 0.000000e+00 : f32
    %22 = vector.broadcast %cst_15 : f32 to vector<16x256xf32>
    %23 = arith.maximumf %21, %22 : vector<16x256xf32>
    %24 = math.tanh %23 : vector<16x256xf32>
    %25 = arith.truncf %7 : vector<16x256xf32> to vector<16x256xbf16>
    %c0_16 = arith.constant 0 : index
    %c0_17 = arith.constant 0 : index
    %26 = vector.load %arg7[%c0_16, %c0_17] : memref<256x256xbf16, #tpu.memory_space<vmem>>, vector<256x256xbf16>
    %cst_18 = arith.constant dense<0.000000e+00> : vector<16x256xf32>
    %27 = tpu.matmul %25, %26, %cst_18 {dimension_numbers = #tpu.dot_dimension_numbers<[1], [0], [0], [1], [0, 0, 1, 1], [], []>} : vector<16x256xbf16>, vector<256x256xbf16>, vector<16x256xf32> -> vector<16x256xf32>
    %c0_19 = arith.constant 0 : index
    %c0_20 = arith.constant 0 : index
    %28 = vector.load %arg8[%c0_19, %c0_20] : memref<1x256xf32, #tpu.memory_space<vmem>>, vector<1x256xf32>
    %29 = vector.broadcast %28 : vector<1x256xf32> to vector<16x256xf32>
    %30 = arith.addf %27, %29 : vector<16x256xf32>
    %c0_21 = arith.constant 0 : index
    %c0_22 = arith.constant 0 : index
    %31 = vector.load %arg9[%c0_21, %c0_22] : memref<1x256xf32, #tpu.memory_space<vmem>>, vector<1x256xf32>
    %32 = vector.broadcast %31 : vector<1x256xf32> to vector<16x256xf32>
    %33 = arith.mulf %30, %32 : vector<16x256xf32>
    %cst_23 = arith.constant dense<0.000000e+00> : vector<16xf32>
    %34 = vector.multi_reduction <add>, %33, %cst_23 [1] : vector<16x256xf32> to vector<16xf32>
    %35 = vector.shape_cast %34 : vector<16xf32> to vector<16x1xf32>
    %c0_24 = arith.constant 0 : index
    %c0_25 = arith.constant 0 : index
    %36 = vector.load %arg10[%c0_24, %c0_25] : memref<1x1xf32, #tpu.memory_space<vmem>>, vector<1x1xf32>
    %37 = vector.broadcast %36 : vector<1x1xf32> to vector<16x1xf32>
    %38 = arith.addf %35, %37 : vector<16x1xf32>
    %39 = tpu.iota {dimensions = array<i32: 1>} : vector<16x256xi32>
    %c255_i32 = arith.constant 255 : i32
    %40 = vector.broadcast %c255_i32 : i32 to vector<16x256xi32>
    %41 = arith.cmpi eq, %39, %40 : vector<16x256xi32>
    %42 = vector.shape_cast %38 : vector<16x1xf32> to vector<16x1xf32>
    %43 = vector.broadcast %42 : vector<16x1xf32> to vector<16x256xf32>
    %44 = arith.select %41, %43, %24 : vector<16x256xi1>, vector<16x256xf32>
    %45 = arith.truncf %44 : vector<16x256xf32> to vector<16x256xbf16>
    %c0_26 = arith.constant 0 : index
    %c0_27 = arith.constant 0 : index
    %46 = vector.load %arg11[%c0_26, %c0_27] : memref<16x256xbf16, #tpu.memory_space<vmem>>, vector<16x256xbf16>
    tpu.vector_store %arg11[%c0_26, %c0_27], %45 {strides = array<i32>} : memref<16x256xbf16, #tpu.memory_space<vmem>>, vector<16x256xbf16>,
    return
  }
  func.func @transform_0(%arg0: i32) -> (i32, i32) {
    %c0_i32 = arith.constant 0 : i32
    %c0_i32_0 = arith.constant 0 : i32
    return %arg0, %c0_i32 : i32, i32
  }
  func.func @transform_1(%arg0: i32) -> (i32, i32) {
    %c0_i32 = arith.constant 0 : i32
    %c0_i32_0 = arith.constant 0 : i32
    %c0_i32_1 = arith.constant 0 : i32
    return %c0_i32, %c0_i32_0 : i32, i32
  }
  func.func @transform_2(%arg0: i32) -> (i32, i32) {
    %c0_i32 = arith.constant 0 : i32
    %c0_i32_0 = arith.constant 0 : i32
    %c0_i32_1 = arith.constant 0 : i32
    return %c0_i32, %c0_i32_0 : i32, i32
  }
  func.func @transform_3(%arg0: i32) -> (i32, i32) {
    %c0_i32 = arith.constant 0 : i32
    %c0_i32_0 = arith.constant 0 : i32
    %c0_i32_1 = arith.constant 0 : i32
    return %c0_i32, %c0_i32_0 : i32, i32
  }
  func.func @transform_4(%arg0: i32) -> (i32, i32) {
    %c0_i32 = arith.constant 0 : i32
    %c0_i32_0 = arith.constant 0 : i32
    %c0_i32_1 = arith.constant 0 : i32
    return %c0_i32, %c0_i32_0 : i32, i32
  }
  func.func @transform_5(%arg0: i32) -> (i32, i32) {
    %c0_i32 = arith.constant 0 : i32
    %c0_i32_0 = arith.constant 0 : i32
    %c0_i32_1 = arith.constant 0 : i32
    return %c0_i32, %c0_i32_0 : i32, i32
  }
  func.func @transform_6(%arg0: i32) -> (i32, i32) {
    %c0_i32 = arith.constant 0 : i32
    %c0_i32_0 = arith.constant 0 : i32
    %c0_i32_1 = arith.constant 0 : i32
    return %c0_i32, %c0_i32_0 : i32, i32
  }
  func.func @transform_7(%arg0: i32) -> (i32, i32) {
    %c0_i32 = arith.constant 0 : i32
    %c0_i32_0 = arith.constant 0 : i32
    %c0_i32_1 = arith.constant 0 : i32
    return %c0_i32, %c0_i32_0 : i32, i32
  }
  func.func @transform_8(%arg0: i32) -> (i32, i32) {
    %c0_i32 = arith.constant 0 : i32
    %c0_i32_0 = arith.constant 0 : i32
    %c0_i32_1 = arith.constant 0 : i32
    return %c0_i32, %c0_i32_0 : i32, i32
  }
  func.func @transform_9(%arg0: i32) -> (i32, i32) {
    %c0_i32 = arith.constant 0 : i32
    %c0_i32_0 = arith.constant 0 : i32
    %c0_i32_1 = arith.constant 0 : i32
    return %c0_i32, %c0_i32_0 : i32, i32
  }
  func.func @transform_10(%arg0: i32) -> (i32, i32) {
    %c0_i32 = arith.constant 0 : i32
    %c0_i32_0 = arith.constant 0 : i32
    return %arg0, %c0_i32 : i32, i32
  }
}

</mosaic_0001>

<llo_original>
// kernel: tpu_custom_call.1
$region0: #{tpu_custom_call.1}
  #allocation0 [shape = 'u32[]', space=smem, size = 0x4, offset = 0x4, fixed_abs, tag = 'smem constant byte address 0x4 - core index']
  #allocation1 [shape = 'u32[144,128]{1,0:T(1,128)}', space=vmem, size = 0x12000, scoped, tag = 'internal scratch']
  #allocation2 [shape = 'f32[1,1]{1,0:T(1,128)S(1)}', space=vmem, size = 0x200, scoped, tag = 'scoped memory for tpu_custom_call.1']
  %s0 = inlined_call_operand.hbm [shape: f32[16,128], index: 0, kind: input, shape index: {}]
  %s1 = inlined_call_operand.hbm [shape: bf16[128,512], index: 1, kind: input, shape index: {}]
  %s2 = inlined_call_operand.hbm [shape: bf16[256,256], index: 2, kind: input, shape index: {}]
  %s3 = inlined_call_operand.vmem [shape: f32[1,256], index: 3, kind: input, shape index: {}]
  %s4 = inlined_call_operand.hbm [shape: bf16[256,256], index: 4, kind: input, shape index: {}]
  %s5 = inlined_call_operand.vmem [shape: f32[1,256], index: 5, kind: input, shape index: {}]
  %s6 = inlined_call_operand.hbm [shape: bf16[256,256], index: 6, kind: input, shape index: {}]
  %s7 = inlined_call_operand.vmem [shape: f32[1,256], index: 7, kind: input, shape index: {}]
  %s8 = inlined_call_operand.vmem [shape: f32[1,256], index: 8, kind: input, shape index: {}]
  %s9 = inlined_call_operand.<no memory space> [shape: f32[1,1], index: 9, kind: input, shape index: {}]
  %s10 = inlined_call_operand.hbm [shape: bf16[16,256], index: 10, kind: output, shape index: {}]
  %s11 = sld [smem:[#allocation0]]
  $region70: #{tpu_custom_call.1} parent=0
    _
  %s13 = ssub.s32 1, %s11
  %s14 = scalar_select 0, %s13, %s11
  %v15 = vstv %s9
  %16 = vst [vmem:[#allocation2] sm:$0x1] %v15
  $region1: #{tpu_custom_call.1} parent=0
    #allocation3 [shape = 'u8[8192]{0}', space=vmem, size = 0x2000, scoped, tag = 'input window, operand 0, single buffered']
    #allocation4 [shape = 's32[1]{0}', space=sflag, size = 0x4, scoped, tag = 'scoped memory for tpu_custom_call.1']
    #allocation5 [shape = 's32[1]{0}', space=sflag, size = 0x4, scoped, tag = 'scoped memory for tpu_custom_call.1']
    #allocation6 [shape = 'u8[131072]{0}', space=vmem, size = 0x20000, scoped, tag = 'input window, operand 1, single buffered']
    #allocation7 [shape = 's32[1]{0}', space=sflag, size = 0x4, scoped, tag = 'scoped memory for tpu_custom_call.1']
    #allocation8 [shape = 'u8[131072]{0}', space=vmem, size = 0x20000, scoped, tag = 'input window, operand 2, single buffered']
    #allocation9 [shape = 'u8[131072]{0}', space=vmem, size = 0x20000, scoped, tag = 'input window, operand 4, single buffered']
    #allocation10 [shape = 's32[1]{0}', space=sflag, size = 0x4, scoped, tag = 'scoped memory for tpu_custom_call.1']
    #allocation11 [shape = 'u8[131072]{0}', space=vmem, size = 0x20000, scoped, tag = 'input window, operand 6, single buffered']
    #allocation12 [shape = 'u8[8192]{0}', space=vmem, size = 0x2000, scoped, tag = 'output window, operand 0, single buffered']
    %17 = vsyncpa [#allocation4], 0
    %18 = vsyncpa [#allocation7], 0
    %19 = vsyncpa [#allocation10], 0
    %20 = vsyncpa [#allocation5], 0
    // Predicated region
    $region2: #{tpu_custom_call.1} parent=1 // pred_check
      _
    $region3: #{tpu_custom_call.1} parent=1 // pred_check_branch
      %22 = sbr.rel (0) target = $region5
    $region4: #{tpu_custom_call.1} parent=1 // pred_region
      %s24 = ssub.s32 256, 256
      %25 = vsyncadd [#allocation4], %s24
      %s26 = sshll.u32 [#allocation3], 4
      %s27 = int_to_ptr.vmem [resolvable:$true] %s26
      %32 = dma.hbm_to_vmem [thread:$0]  %s0, 256, %s27, [#allocation4], 128, 128, 8
    $region5: #{tpu_custom_call.1} parent=1 // pred_fallthru
      _
    // Predicated region
    $region6: #{tpu_custom_call.1} parent=1 // pred_check
      _
    $region7: #{tpu_custom_call.1} parent=1 // pred_check_branch
      %34 = sbr.rel (0) target = $region9
    $region8: #{tpu_custom_call.1} parent=1 // pred_region
      %s36 = ssub.s32 4096, 4096
      %37 = vsyncadd [#allocation7], %s36
      %s38 = sshll.u32 [#allocation6], 4
      %s39 = int_to_ptr.vmem [resolvable:$true] %s38
      %44 = dma.hbm_to_vmem [thread:$0]  %s1, 4096, %s39, [#allocation7], 256, 256, 16
    $region9: #{tpu_custom_call.1} parent=1 // pred_fallthru
      _
    // Predicated region
    $region10: #{tpu_custom_call.1} parent=1 // pred_check
      _
    $region11: #{tpu_custom_call.1} parent=1 // pred_check_branch
      %46 = sbr.rel (0) target = $region13
    $region12: #{tpu_custom_call.1} parent=1 // pred_region
      %s48 = ssub.s32 4096, 4096
      %49 = vsyncadd [#allocation7], %s48
      %s50 = sshll.u32 [#allocation8], 4
      %s51 = int_to_ptr.vmem [resolvable:$true] %s50
      %56 = dma.hbm_to_vmem [thread:$0]  %s2, 4096, %s51, [#allocation7], 128, 128, 8
    $region13: #{tpu_custom_call.1} parent=1 // pred_fallthru
      _
    // Predicated region
    $region14: #{tpu_custom_call.1} parent=1 // pred_check
      _
    $region15: #{tpu_custom_call.1} parent=1 // pred_check_branch
      %58 = sbr.rel (0) target = $region17
    $region16: #{tpu_custom_call.1} parent=1 // pred_region
      _
    $region17: #{tpu_custom_call.1} parent=1 // pred_fallthru
      _
    // Predicated region
    $region18: #{tpu_custom_call.1} parent=1 // pred_check
      _
    $region19: #{tpu_custom_call.1} parent=1 // pred_check_branch
      %60 = sbr.rel (0) target = $region21
    $region20: #{tpu_custom_call.1} parent=1 // pred_region
      %s62 = ssub.s32 4096, 4096
      %63 = vsyncadd [#allocation10], %s62
      %s64 = sshll.u32 [#allocation9], 4
      %s65 = int_to_ptr.vmem [resolvable:$true] %s64
      %70 = dma.hbm_to_vmem [thread:$0]  %s4, 4096, %s65, [#allocation10], 128, 128, 8
    $region21: #{tpu_custom_call.1} parent=1 // pred_fallthru
      _
    // Predicated region
    $region22: #{tpu_custom_call.1} parent=1 // pred_check
      _
    $region23: #{tpu_custom_call.1} parent=1 // pred_check_branch
      %72 = sbr.rel (0) target = $region25
    $region24: #{tpu_custom_call.1} parent=1 // pred_region
      _
    $region25: #{tpu_custom_call.1} parent=1 // pred_fallthru
      _
    // Predicated region
    $region26: #{tpu_custom_call.1} parent=1 // pred_check
      _
    $region27: #{tpu_custom_call.1} parent=1 // pred_check_branch
      %74 = sbr.rel (0) target = $region29
    $region28: #{tpu_custom_call.1} parent=1 // pred_region
      %s76 = ssub.s32 4096, 4096
      %77 = vsyncadd [#allocation10], %s76
      %s78 = sshll.u32 [#allocation11], 4
      %s79 = int_to_ptr.vmem [resolvable:$true] %s78
      %84 = dma.hbm_to_vmem [thread:$0]  %s6, 4096, %s79, [#allocation10], 128, 128, 8
    $region29: #{tpu_custom_call.1} parent=1 // pred_fallthru
      _
    // Predicated region
    $region30: #{tpu_custom_call.1} parent=1 // pred_check
      _
    $region31: #{tpu_custom_call.1} parent=1 // pred_check_branch
      %86 = sbr.rel (0) target = $region33
    $region32: #{tpu_custom_call.1} parent=1 // pred_region
      _
    $region33: #{tpu_custom_call.1} parent=1 // pred_fallthru
      _
    // Predicated region
    $region34: #{tpu_custom_call.1} parent=1 // pred_check
      _
    $region35: #{tpu_custom_call.1} parent=1 // pred_check_branch
      %88 = sbr.rel (0) target = $region37
    $region36: #{tpu_custom_call.1} parent=1 // pred_region
      _
    $region37: #{tpu_custom_call.1} parent=1 // pred_fallthru
      _
    // Predicated region
    $region38: #{tpu_custom_call.1} parent=1 // pred_check
      _
    $region39: #{tpu_custom_call.1} parent=1 // pred_check_branch
      %90 = sbr.rel (0) target = $region41
    $region40: #{tpu_custom_call.1} parent=1 // pred_region
      _
    $region41: #{tpu_custom_call.1} parent=1 // pred_fallthru
      _
    // Predicated region
    $region42: #{tpu_custom_call.1} parent=1 // pred_check
      _
    $region43: #{tpu_custom_call.1} parent=1 // pred_check_branch
      %92 = sbr.rel (0) target = $region45
    $region44: #{tpu_custom_call.1} parent=1 // pred_region
      %93 = dma.done [#allocation4], 256
    $region45: #{tpu_custom_call.1} parent=1 // pred_fallthru
      _
    // Predicated region
    $region46: #{tpu_custom_call.1} parent=1 // pred_check
      _
    $region47: #{tpu_custom_call.1} parent=1 // pred_check_branch
      %95 = sbr.rel (0) target = $region49
    $region48: #{tpu_custom_call.1} parent=1 // pred_region
      %96 = dma.done [#allocation7], 4096
    $region49: #{tpu_custom_call.1} parent=1 // pred_fallthru
      _
    // Predicated region
    $region50: #{tpu_custom_call.1} parent=1 // pred_check
      _
    $region51: #{tpu_custom_call.1} parent=1 // pred_check_branch
      %98 = sbr.rel (0) target = $region53
    $region52: #{tpu_custom_call.1} parent=1 // pred_region
      %99 = dma.done [#allocation7], 4096
    $region53: #{tpu_custom_call.1} parent=1 // pred_fallthru
      _
    // Predicated region
    $region54: #{tpu_custom_call.1} parent=1 // pred_check
      _
    $region55: #{tpu_custom_call.1} parent=1 // pred_check_branch
      %101 = sbr.rel (0) target = $region57
    $region56: #{tpu_custom_call.1} parent=1 // pred_region
      %102 = dma.done [#allocation10], 4096
    $region57: #{tpu_custom_call.1} parent=1 // pred_fallthru
      _
    // Predicated region
    $region58: #{tpu_custom_call.1} parent=1 // pred_check
      _
    $region59: #{tpu_custom_call.1} parent=1 // pred_check_branch
      %104 = sbr.rel (0) target = $region61
    $region60: #{tpu_custom_call.1} parent=1 // pred_region
      %105 = dma.done [#allocation10], 4096
    $region61: #{tpu_custom_call.1} parent=1 // pred_fallthru
      _
    %v107 = vld [vmem:[#allocation3] sm:$0xff]
    %v108 = vld [vmem:[#allocation3 + $0x8] sm:$0xff]
    %v109 = vpack.c.bf16 %v108, %v107
    %v110 = vld [vmem:[#allocation6] sm:$0xff]
    %v111 = vld [vmem:[#allocation6 + $0x8] sm:$0xff]
    %v112 = vld [vmem:[#allocation6 + $0x10] sm:$0xff]
    %v113 = vld [vmem:[#allocation6 + $0x18] sm:$0xff]
    %v114 = vld [vmem:[#allocation6 + $0x20] sm:$0xff]
    %v115 = vld [vmem:[#allocation6 + $0x28] sm:$0xff]
    %v116 = vld [vmem:[#allocation6 + $0x30] sm:$0xff]
    %v117 = vld [vmem:[#allocation6 + $0x38] sm:$0xff]
    %v118 = vld [vmem:[#allocation6 + $0x40] sm:$0xff]
    %v119 = vld [vmem:[#allocation6 + $0x48] sm:$0xff]
    %v120 = vld [vmem:[#allocation6 + $0x50] sm:$0xff]
    %v121 = vld [vmem:[#allocation6 + $0x58] sm:$0xff]
    %v122 = vld [vmem:[#allocation6 + $0x60] sm:$0xff]
    %v123 = vld [vmem:[#allocation6 + $0x68] sm:$0xff]
    %v124 = vld [vmem:[#allocation6 + $0x70] sm:$0xff]
    %v125 = vld [vmem:[#allocation6 + $0x78] sm:$0xff]
    %v126 = vld [vmem:[#allocation6 + $0x80] sm:$0xff]
    %v127 = vld [vmem:[#allocation6 + $0x88] sm:$0xff]
    %v128 = vld [vmem:[#allocation6 + $0x90] sm:$0xff]
    %v129 = vld [vmem:[#allocation6 + $0x98] sm:$0xff]
    %v130 = vld [vmem:[#allocation6 + $0xa0] sm:$0xff]
    %v131 = vld [vmem:[#allocation6 + $0xa8] sm:$0xff]
    %v132 = vld [vmem:[#allocation6 + $0xb0] sm:$0xff]
    %v133 = vld [vmem:[#allocation6 + $0xb8] sm:$0xff]
    %v134 = vld [vmem:[#allocation6 + $0xc0] sm:$0xff]
    %v135 = vld [vmem:[#allocation6 + $0xc8] sm:$0xff]
    %v136 = vld [vmem:[#allocation6 + $0xd0] sm:$0xff]
    %v137 = vld [vmem:[#allocation6 + $0xd8] sm:$0xff]
    %v138 = vld [vmem:[#allocation6 + $0xe0] sm:$0xff]
    %v139 = vld [vmem:[#allocation6 + $0xe8] sm:$0xff]
    %v140 = vld [vmem:[#allocation6 + $0xf0] sm:$0xff]
    %v141 = vld [vmem:[#allocation6 + $0xf8] sm:$0xff]
    %v174 = vunpack.c.l.b16 %v110
    %v175 = vunpack.c.h.b16 %v110
    %v176 = vunpack.c.l.b16 %v111
    %v177 = vunpack.c.h.b16 %v111
    %v178 = vunpack.c.l.b16 %v112
    %v179 = vunpack.c.h.b16 %v112
    %v180 = vunpack.c.l.b16 %v113
    %v181 = vunpack.c.h.b16 %v113
    %v182 = vunpack.c.l.b16 %v114
    %v183 = vunpack.c.h.b16 %v114
    %v184 = vunpack.c.l.b16 %v115
    %v185 = vunpack.c.h.b16 %v115
    %v186 = vunpack.c.l.b16 %v116
    %v187 = vunpack.c.h.b16 %v116
    %v188 = vunpack.c.l.b16 %v117
    %v189 = vunpack.c.h.b16 %v117
    %v190 = vunpack.c.l.b16 %v118
    %v191 = vunpack.c.h.b16 %v118
    %v192 = vunpack.c.l.b16 %v119
    %v193 = vunpack.c.h.b16 %v119
    %v194 = vunpack.c.l.b16 %v120
    %v195 = vunpack.c.h.b16 %v120
    %v196 = vunpack.c.l.b16 %v121
    %v197 = vunpack.c.h.b16 %v121
    %v198 = vunpack.c.l.b16 %v122
    %v199 = vunpack.c.h.b16 %v122
    %v200 = vunpack.c.l.b16 %v123
    %v201 = vunpack.c.h.b16 %v123
    %v202 = vunpack.c.l.b16 %v124
    %v203 = vunpack.c.h.b16 %v124
    %v204 = vunpack.c.l.b16 %v125
    %v205 = vunpack.c.h.b16 %v125
    %v206 = vunpack.c.l.b16 %v126
    %v207 = vunpack.c.h.b16 %v126
    %v208 = vunpack.c.l.b16 %v127
    %v209 = vunpack.c.h.b16 %v127
    %v210 = vunpack.c.l.b16 %v128
    %v211 = vunpack.c.h.b16 %v128
    %v212 = vunpack.c.l.b16 %v129
    %v213 = vunpack.c.h.b16 %v129
    %v214 = vunpack.c.l.b16 %v130
    %v215 = vunpack.c.h.b16 %v130
    %v216 = vunpack.c.l.b16 %v131
    %v217 = vunpack.c.h.b16 %v131
    %v218 = vunpack.c.l.b16 %v132
    %v219 = vunpack.c.h.b16 %v132
    %v220 = vunpack.c.l.b16 %v133
    %v221 = vunpack.c.h.b16 %v133
    %v222 = vunpack.c.l.b16 %v134
    %v223 = vunpack.c.h.b16 %v134
    %v224 = vunpack.c.l.b16 %v135
    %v225 = vunpack.c.h.b16 %v135
    %v226 = vunpack.c.l.b16 %v136
    %v227 = vunpack.c.h.b16 %v136
    %v228 = vunpack.c.l.b16 %v137
    %v229 = vunpack.c.h.b16 %v137
    %v230 = vunpack.c.l.b16 %v138
    %v231 = vunpack.c.h.b16 %v138
    %v232 = vunpack.c.l.b16 %v139
    %v233 = vunpack.c.h.b16 %v139
    %v234 = vunpack.c.l.b16 %v140
    %v235 = vunpack.c.h.b16 %v140
    %v236 = vunpack.c.l.b16 %v141
    %v237 = vunpack.c.h.b16 %v141
    %v238 = vpack.c.b16 %v178, %v174
    %v239 = vpack.c.b16 %v179, %v175
    %v240 = vpack.c.b16 %v180, %v176
    %v241 = vpack.c.b16 %v181, %v177
    %v242 = vpack.c.b16 %v186, %v182
    %v243 = vpack.c.b16 %v187, %v183
    %v244 = vpack.c.b16 %v188, %v184
    %v245 = vpack.c.b16 %v189, %v185
    %v246 = vpack.c.b16 %v194, %v190
    %v247 = vpack.c.b16 %v195, %v191
    %v248 = vpack.c.b16 %v196, %v192
    %v249 = vpack.c.b16 %v197, %v193
    %v250 = vpack.c.b16 %v202, %v198
    %v251 = vpack.c.b16 %v203, %v199
    %v252 = vpack.c.b16 %v204, %v200
    %v253 = vpack.c.b16 %v205, %v201
    %v254 = vpack.c.b16 %v210, %v206
    %v255 = vpack.c.b16 %v211, %v207
    %v256 = vpack.c.b16 %v212, %v208
    %v257 = vpack.c.b16 %v213, %v209
    %v258 = vpack.c.b16 %v218, %v214
    %v259 = vpack.c.b16 %v219, %v215
    %v260 = vpack.c.b16 %v220, %v216
    %v261 = vpack.c.b16 %v221, %v217
    %v262 = vpack.c.b16 %v226, %v222
    %v263 = vpack.c.b16 %v227, %v223
    %v264 = vpack.c.b16 %v228, %v224
    %v265 = vpack.c.b16 %v229, %v225
    %v266 = vpack.c.b16 %v234, %v230
    %v267 = vpack.c.b16 %v235, %v231
    %v268 = vpack.c.b16 %v236, %v232
    %v269 = vpack.c.b16 %v237, %v233
    %302 = vmatprep.subr.bf16.mxu0 %v267
    %303 = vmatpush1.bf16.msra.mxu0 %v266
    %304 = vmatprep.subr.bf16.mxu0 %v263
    %305 = vmatpush1.bf16.msra.mxu0 %v262
    %306 = vmatprep.subr.bf16.mxu0 %v259
    %307 = vmatpush1.bf16.msra.mxu0 %v258
    %308 = vmatprep.subr.bf16.mxu0 %v255
    %309 = vmatpush1.bf16.msra.mxu0 %v254
    %310 = vmatprep.subr.bf16.mxu0 %v251
    %311 = vmatpush1.bf16.msra.mxu0 %v250
    %312 = vmatprep.subr.bf16.mxu0 %v247
    %313 = vmatpush1.bf16.msra.mxu0 %v246
    %314 = vmatprep.subr.bf16.mxu0 %v243
    %315 = vmatpush1.bf16.msra.mxu0 %v242
    %316 = vmatprep.subr.bf16.mxu0 %v239
    %317 = vmatpush1.bf16.msra.mxu0 %v238
    %318 = vmatprep.subr.bf16.mxu0 0
    %319 = vmatpush2.bf16.msra.mxu0 0
    %320 = vmatprep.subr.bf16.mxu0 0
    %321 = vmatpush2.bf16.msra.mxu0 0
    %322 = vmatprep.subr.bf16.mxu0 0
    %323 = vmatpush2.bf16.msra.mxu0 0
    %324 = vmatprep.subr.bf16.mxu0 0
    %325 = vmatpush2.bf16.msra.mxu0 0
    %326 = vmatprep.subr.bf16.mxu0 0
    %327 = vmatpush2.bf16.msra.mxu0 0
    %328 = vmatprep.subr.bf16.mxu0 0
    %329 = vmatpush2.bf16.msra.mxu0 0
    %330 = vmatprep.subr.bf16.mxu0 0
    %331 = vmatpush2.bf16.msra.mxu0 0
    %332 = vmatprep.subr.bf16.mxu0 0
    %333 = vmatpush2.bf16.msra.mxu0 0
    %334 = vmatprep.mubr.bf16.mxu0 0
    %335 = vmatmul.mubr.bf16.gmra.mxu0 %v109
    %v336 = vpop.f32.mrf.mxu0
    %v337 = vadd.f32 0.0, %v336
    %v338 = vpop.f32.mrf.mxu0
    %v339 = vadd.f32 0.0, %v338
    %v340 = vpop.f32.mrf.mxu0
    %v341 = vadd.f32 0.0, %v340
    %v342 = vpop.f32.mrf.mxu0
    %v343 = vadd.f32 0.0, %v342
    %344 = vdwg.mxu0
    %345 = vmatprep.subr.bf16.mxu0 %v269
    %346 = vmatpush1.bf16.msra.mxu0 %v268
    %347 = vmatprep.subr.bf16.mxu0 %v265
    %348 = vmatpush1.bf16.msra.mxu0 %v264
    %349 = vmatprep.subr.bf16.mxu0 %v261
    %350 = vmatpush1.bf16.msra.mxu0 %v260
    %351 = vmatprep.subr.bf16.mxu0 %v257
    %352 = vmatpush1.bf16.msra.mxu0 %v256
    %353 = vmatprep.subr.bf16.mxu0 %v253
    %354 = vmatpush1.bf16.msra.mxu0 %v252
    %355 = vmatprep.subr.bf16.mxu0 %v249
    %356 = vmatpush1.bf16.msra.mxu0 %v248
    %357 = vmatprep.subr.bf16.mxu0 %v245
    %358 = vmatpush1.bf16.msra.mxu0 %v244
    %359 = vmatprep.subr.bf16.mxu0 %v241
    %360 = vmatpush1.bf16.msra.mxu0 %v240
    %361 = vmatprep.subr.bf16.mxu0 0
    %362 = vmatpush2.bf16.msra.mxu0 0
    %363 = vmatprep.subr.bf16.mxu0 0
    %364 = vmatpush2.bf16.msra.mxu0 0
    %365 = vmatprep.subr.bf16.mxu0 0
    %366 = vmatpush2.bf16.msra.mxu0 0
    %367 = vmatprep.subr.bf16.mxu0 0
    %368 = vmatpush2.bf16.msra.mxu0 0
    %369 = vmatprep.subr.bf16.mxu0 0
    %370 = vmatpush2.bf16.msra.mxu0 0
    %371 = vmatprep.subr.bf16.mxu0 0
    %372 = vmatpush2.bf16.msra.mxu0 0
    %373 = vmatprep.subr.bf16.mxu0 0
    %374 = vmatpush2.bf16.msra.mxu0 0
    %375 = vmatprep.subr.bf16.mxu0 0
    %376 = vmatpush2.bf16.msra.mxu0 0
    %377 = vmatprep.mubr.bf16.mxu0 0
    %378 = vmatmul.mubr.bf16.gmra.mxu0 %v109
    %v379 = vpop.f32.mrf.mxu0
    %v380 = vadd.f32 0.0, %v379
    %v381 = vpop.f32.mrf.mxu0
    %v382 = vadd.f32 0.0, %v381
    %v383 = vpop.f32.mrf.mxu0
    %v384 = vadd.f32 0.0, %v383
    %v385 = vpop.f32.mrf.mxu0
    %v386 = vadd.f32 0.0, %v385
    %387 = vdwg.mxu0
    %v388 = vmax.f32 %v337, 0.0
    %v389 = vmax.f32 %v339, 0.0
    %v390 = vmax.f32 %v341, 0.0
    %v391 = vmax.f32 %v343, 0.0
    %v392 = vpack.c.bf16 %v390, %v388
    %v393 = vpack.c.bf16 %v391, %v389
    %v394 = vld [vmem:[#allocation8] sm:$0xff]
    %v395 = vld [vmem:[#allocation8 + $0x8] sm:$0xff]
    %v396 = vld [vmem:[#allocation8 + $0x10] sm:$0xff]
    %v397 = vld [vmem:[#allocation8 + $0x18] sm:$0xff]
    %v398 = vld [vmem:[#allocation8 + $0x20] sm:$0xff]
    %v399 = vld [vmem:[#allocation8 + $0x28] sm:$0xff]
    %v400 = vld [vmem:[#allocation8 + $0x30] sm:$0xff]
    %v401 = vld [vmem:[#allocation8 + $0x38] sm:$0xff]
    %v402 = vld [vmem:[#allocation8 + $0x40] sm:$0xff]
    %v403 = vld [vmem:[#allocation8 + $0x48] sm:$0xff]
    %v404 = vld [vmem:[#allocation8 + $0x50] sm:$0xff]
    %v405 = vld [vmem:[#allocation8 + $0x58] sm:$0xff]
    %v406 = vld [vmem:[#allocation8 + $0x60] sm:$0xff]
    %v407 = vld [vmem:[#allocation8 + $0x68] sm:$0xff]
    %v408 = vld [vmem:[#allocation8 + $0x70] sm:$0xff]
    %v409 = vld [vmem:[#allocation8 + $0x78] sm:$0xff]
    %v410 = vld [vmem:[#allocation8 + $0x80] sm:$0xff]
    %v411 = vld [vmem:[#allocation8 + $0x88] sm:$0xff]
    %v412 = vld [vmem:[#allocation8 + $0x90] sm:$0xff]
    %v413 = vld [vmem:[#allocation8 + $0x98] sm:$0xff]
    %v414 = vld [vmem:[#allocation8 + $0xa0] sm:$0xff]
    %v415 = vld [vmem:[#allocation8 + $0xa8] sm:$0xff]
    %v416 = vld [vmem:[#allocation8 + $0xb0] sm:$0xff]
    %v417 = vld [vmem:[#allocation8 + $0xb8] sm:$0xff]
    %v418 = vld [vmem:[#allocation8 + $0xc0] sm:$0xff]
    %v419 = vld [vmem:[#allocation8 + $0xc8] sm:$0xff]
    %v420 = vld [vmem:[#allocation8 + $0xd0] sm:$0xff]
    %v421 = vld [vmem:[#allocation8 + $0xd8] sm:$0xff]
    %v422 = vld [vmem:[#allocation8 + $0xe0] sm:$0xff]
    %v423 = vld [vmem:[#allocation8 + $0xe8] sm:$0xff]
    %v424 = vld [vmem:[#allocation8 + $0xf0] sm:$0xff]
    %v425 = vld [vmem:[#allocation8 + $0xf8] sm:$0xff]
    %v426 = vld [vmem:[%s3] sm:$0x3]
    %v428 = vlaneseq
    %v429 = vshrl.u32 %v428, 7
    %v430 = vsub.s32 0, %v429
    %v431 = vrot.slane %v426, %v430
    %v432 = vlaneseq
    %v433 = vshrl.u32 %v432, 7
    %v434 = vsub.s32 1, %v433
    %v435 = vrot.slane %v426, %v434
    %v470 = vunpack.c.l.b16 %v394
    %v471 = vunpack.c.h.b16 %v394
    %v472 = vunpack.c.l.b16 %v395
    %v473 = vunpack.c.h.b16 %v395
    %v474 = vunpack.c.l.b16 %v396
    %v475 = vunpack.c.h.b16 %v396
    %v476 = vunpack.c.l.b16 %v397
    %v477 = vunpack.c.h.b16 %v397
    %v478 = vunpack.c.l.b16 %v398
    %v479 = vunpack.c.h.b16 %v398
    %v480 = vunpack.c.l.b16 %v399
    %v481 = vunpack.c.h.b16 %v399
    %v482 = vunpack.c.l.b16 %v400
    %v483 = vunpack.c.h.b16 %v400
    %v484 = vunpack.c.l.b16 %v401
    %v485 = vunpack.c.h.b16 %v401
    %v486 = vunpack.c.l.b16 %v402
    %v487 = vunpack.c.h.b16 %v402
    %v488 = vunpack.c.l.b16 %v403
    %v489 = vunpack.c.h.b16 %v403
    %v490 = vunpack.c.l.b16 %v404
    %v491 = vunpack.c.h.b16 %v404
    %v492 = vunpack.c.l.b16 %v405
    %v493 = vunpack.c.h.b16 %v405
    %v494 = vunpack.c.l.b16 %v406
    %v495 = vunpack.c.h.b16 %v406
    %v496 = vunpack.c.l.b16 %v407
    %v497 = vunpack.c.h.b16 %v407
    %v498 = vunpack.c.l.b16 %v408
    %v499 = vunpack.c.h.b16 %v408
    %v500 = vunpack.c.l.b16 %v409
    %v501 = vunpack.c.h.b16 %v409
    %v502 = vunpack.c.l.b16 %v410
    %v503 = vunpack.c.h.b16 %v410
    %v504 = vunpack.c.l.b16 %v411
    %v505 = vunpack.c.h.b16 %v411
    %v506 = vunpack.c.l.b16 %v412
    %v507 = vunpack.c.h.b16 %v412
    %v508 = vunpack.c.l.b16 %v413
    %v509 = vunpack.c.h.b16 %v413
    %v510 = vunpack.c.l.b16 %v414
    %v511 = vunpack.c.h.b16 %v414
    %v512 = vunpack.c.l.b16 %v415
    %v513 = vunpack.c.h.b16 %v415
    %v514 = vunpack.c.l.b16 %v416
    %v515 = vunpack.c.h.b16 %v416
    %v516 = vunpack.c.l.b16 %v417
    %v517 = vunpack.c.h.b16 %v417
    %v518 = vunpack.c.l.b16 %v418
    %v519 = vunpack.c.h.b16 %v418
    %v520 = vunpack.c.l.b16 %v419
    %v521 = vunpack.c.h.b16 %v419
    %v522 = vunpack.c.l.b16 %v420
    %v523 = vunpack.c.h.b16 %v420
    %v524 = vunpack.c.l.b16 %v421
    %v525 = vunpack.c.h.b16 %v421
    %v526 = vunpack.c.l.b16 %v422
    %v527 = vunpack.c.h.b16 %v422
    %v528 = vunpack.c.l.b16 %v423
    %v529 = vunpack.c.h.b16 %v423
    %v530 = vunpack.c.l.b16 %v424
    %v531 = vunpack.c.h.b16 %v424
    %v532 = vunpack.c.l.b16 %v425
    %v533 = vunpack.c.h.b16 %v425
    %v534 = vpack.c.b16 %v472, %v470
    %v535 = vpack.c.b16 %v473, %v471
    %v536 = vpack.c.b16 %v476, %v474
    %v537 = vpack.c.b16 %v477, %v475
    %v538 = vpack.c.b16 %v480, %v478
    %v539 = vpack.c.b16 %v481, %v479
    %v540 = vpack.c.b16 %v484, %v482
    %v541 = vpack.c.b16 %v485, %v483
    %v542 = vpack.c.b16 %v488, %v486
    %v543 = vpack.c.b16 %v489, %v487
    %v544 = vpack.c.b16 %v492, %v490
    %v545 = vpack.c.b16 %v493, %v491
    %v546 = vpack.c.b16 %v496, %v494
    %v547 = vpack.c.b16 %v497, %v495
    %v548 = vpack.c.b16 %v500, %v498
    %v549 = vpack.c.b16 %v501, %v499
    %v550 = vpack.c.b16 %v504, %v502
    %v551 = vpack.c.b16 %v505, %v503
    %v552 = vpack.c.b16 %v508, %v506
    %v553 = vpack.c.b16 %v509, %v507
    %v554 = vpack.c.b16 %v512, %v510
    %v555 = vpack.c.b16 %v513, %v511
    %v556 = vpack.c.b16 %v516, %v514
    %v557 = vpack.c.b16 %v517, %v515
    %v558 = vpack.c.b16 %v520, %v518
    %v559 = vpack.c.b16 %v521, %v519
    %v560 = vpack.c.b16 %v524, %v522
    %v561 = vpack.c.b16 %v525, %v523
    %v562 = vpack.c.b16 %v528, %v526
    %v563 = vpack.c.b16 %v529, %v527
    %v564 = vpack.c.b16 %v532, %v530
    %v565 = vpack.c.b16 %v533, %v531
    %598 = vmatprep.subr.bf16.mxu0 %v549
    %599 = vmatpush1.bf16.msra.mxu0 %v548
    %600 = vmatprep.subr.bf16.mxu0 %v547
    %601 = vmatpush1.bf16.msra.mxu0 %v546
    %602 = vmatprep.subr.bf16.mxu0 %v545
    %603 = vmatpush1.bf16.msra.mxu0 %v544
    %604 = vmatprep.subr.bf16.mxu0 %v543
    %605 = vmatpush1.bf16.msra.mxu0 %v542
    %606 = vmatprep.subr.bf16.mxu0 %v541
    %607 = vmatpush1.bf16.msra.mxu0 %v540
    %608 = vmatprep.subr.bf16.mxu0 %v539
    %609 = vmatpush1.bf16.msra.mxu0 %v538
    %610 = vmatprep.subr.bf16.mxu0 %v537
    %611 = vmatpush1.bf16.msra.mxu0 %v536
    %612 = vmatprep.subr.bf16.mxu0 %v535
    %613 = vmatpush1.bf16.msra.mxu0 %v534
    %614 = vmatprep.subr.bf16.mxu0 %v565
    %615 = vmatpush2.bf16.msra.mxu0 %v564
    %616 = vmatprep.subr.bf16.mxu0 %v563
    %617 = vmatpush2.bf16.msra.mxu0 %v562
    %618 = vmatprep.subr.bf16.mxu0 %v561
    %619 = vmatpush2.bf16.msra.mxu0 %v560
    %620 = vmatprep.subr.bf16.mxu0 %v559
    %621 = vmatpush2.bf16.msra.mxu0 %v558
    %622 = vmatprep.subr.bf16.mxu0 %v557
    %623 = vmatpush2.bf16.msra.mxu0 %v556
    %624 = vmatprep.subr.bf16.mxu0 %v555
    %625 = vmatpush2.bf16.msra.mxu0 %v554
    %626 = vmatprep.subr.bf16.mxu0 %v553
    %627 = vmatpush2.bf16.msra.mxu0 %v552
    %628 = vmatprep.subr.bf16.mxu0 %v551
    %629 = vmatpush2.bf16.msra.mxu0 %v550
    %630 = vmatprep.mubr.bf16.mxu0 %v393
    %631 = vmatmul.mubr.bf16.gmra.mxu0 %v392
    %v632 = vpop.f32.mrf.mxu0
    %v633 = vadd.f32 %v431, %v632
    %v634 = vpop.f32.mrf.mxu0
    %v635 = vadd.f32 %v435, %v634
    %v636 = vpop.f32.mrf.mxu0
    %v637 = vadd.f32 %v431, %v636
    %v638 = vpop.f32.mrf.mxu0
    %v639 = vadd.f32 %v435, %v638
    %640 = vdwg.mxu0
    %v641 = vmax.f32 %v633, 0.0
    %v642 = vmax.f32 %v635, 0.0
    %v643 = vmax.f32 %v637, 0.0
    %v644 = vmax.f32 %v639, 0.0
    %v645 = vpack.c.bf16 %v643, %v641
    %v646 = vpack.c.bf16 %v644, %v642
    %v647 = vld [vmem:[#allocation9] sm:$0xff]
    %v648 = vld [vmem:[#allocation9 + $0x8] sm:$0xff]
    %v649 = vld [vmem:[#allocation9 + $0x10] sm:$0xff]
    %v650 = vld [vmem:[#allocation9 + $0x18] sm:$0xff]
    %v651 = vld [vmem:[#allocation9 + $0x20] sm:$0xff]
    %v652 = vld [vmem:[#allocation9 + $0x28] sm:$0xff]
    %v653 = vld [vmem:[#allocation9 + $0x30] sm:$0xff]
    %v654 = vld [vmem:[#allocation9 + $0x38] sm:$0xff]
    %v655 = vld [vmem:[#allocation9 + $0x40] sm:$0xff]
    %v656 = vld [vmem:[#allocation9 + $0x48] sm:$0xff]
    %v657 = vld [vmem:[#allocation9 + $0x50] sm:$0xff]
    %v658 = vld [vmem:[#allocation9 + $0x58] sm:$0xff]
    %v659 = vld [vmem:[#allocation9 + $0x60] sm:$0xff]
    %v660 = vld [vmem:[#allocation9 + $0x68] sm:$0xff]
    %v661 = vld [vmem:[#allocation9 + $0x70] sm:$0xff]
    %v662 = vld [vmem:[#allocation9 + $0x78] sm:$0xff]
    %v663 = vld [vmem:[#allocation9 + $0x80] sm:$0xff]
    %v664 = vld [vmem:[#allocation9 + $0x88] sm:$0xff]
    %v665 = vld [vmem:[#allocation9 + $0x90] sm:$0xff]
    %v666 = vld [vmem:[#allocation9 + $0x98] sm:$0xff]
    %v667 = vld [vmem:[#allocation9 + $0xa0] sm:$0xff]
    %v668 = vld [vmem:[#allocation9 + $0xa8] sm:$0xff]
    %v669 = vld [vmem:[#allocation9 + $0xb0] sm:$0xff]
    %v670 = vld [vmem:[#allocation9 + $0xb8] sm:$0xff]
    %v671 = vld [vmem:[#allocation9 + $0xc0] sm:$0xff]
    %v672 = vld [vmem:[#allocation9 + $0xc8] sm:$0xff]
    %v673 = vld [vmem:[#allocation9 + $0xd0] sm:$0xff]
    %v674 = vld [vmem:[#allocation9 + $0xd8] sm:$0xff]
    %v675 = vld [vmem:[#allocation9 + $0xe0] sm:$0xff]
    %v676 = vld [vmem:[#allocation9 + $0xe8] sm:$0xff]
    %v677 = vld [vmem:[#allocation9 + $0xf0] sm:$0xff]
    %v678 = vld [vmem:[#allocation9 + $0xf8] sm:$0xff]
    %v679 = vld [vmem:[%s5] sm:$0x3]
    %v681 = vlaneseq
    %v682 = vshrl.u32 %v681, 7
    %v683 = vsub.s32 0, %v682
    %v684 = vrot.slane %v679, %v683
    %v685 = vlaneseq
    %v686 = vshrl.u32 %v685, 7
    %v687 = vsub.s32 1, %v686
    %v688 = vrot.slane %v679, %v687
    %v723 = vunpack.c.l.b16 %v647
    %v724 = vunpack.c.h.b16 %v647
    %v725 = vunpack.c.l.b16 %v648
    %v726 = vunpack.c.h.b16 %v648
    %v727 = vunpack.c.l.b16 %v649
    %v728 = vunpack.c.h.b16 %v649
    %v729 = vunpack.c.l.b16 %v650
    %v730 = vunpack.c.h.b16 %v650
    %v731 = vunpack.c.l.b16 %v651
    %v732 = vunpack.c.h.b16 %v651
    %v733 = vunpack.c.l.b16 %v652
    %v734 = vunpack.c.h.b16 %v652
    %v735 = vunpack.c.l.b16 %v653
    %v736 = vunpack.c.h.b16 %v653
    %v737 = vunpack.c.l.b16 %v654
    %v738 = vunpack.c.h.b16 %v654
    %v739 = vunpack.c.l.b16 %v655
    %v740 = vunpack.c.h.b16 %v655
    %v741 = vunpack.c.l.b16 %v656
    %v742 = vunpack.c.h.b16 %v656
    %v743 = vunpack.c.l.b16 %v657
    %v744 = vunpack.c.h.b16 %v657
    %v745 = vunpack.c.l.b16 %v658
    %v746 = vunpack.c.h.b16 %v658
    %v747 = vunpack.c.l.b16 %v659
    %v748 = vunpack.c.h.b16 %v659
    %v749 = vunpack.c.l.b16 %v660
    %v750 = vunpack.c.h.b16 %v660
    %v751 = vunpack.c.l.b16 %v661
    %v752 = vunpack.c.h.b16 %v661
    %v753 = vunpack.c.l.b16 %v662
    %v754 = vunpack.c.h.b16 %v662
    %v755 = vunpack.c.l.b16 %v663
    %v756 = vunpack.c.h.b16 %v663
    %v757 = vunpack.c.l.b16 %v664
    %v758 = vunpack.c.h.b16 %v664
    %v759 = vunpack.c.l.b16 %v665
    %v760 = vunpack.c.h.b16 %v665
    %v761 = vunpack.c.l.b16 %v666
    %v762 = vunpack.c.h.b16 %v666
    %v763 = vunpack.c.l.b16 %v667
    %v764 = vunpack.c.h.b16 %v667
    %v765 = vunpack.c.l.b16 %v668
    %v766 = vunpack.c.h.b16 %v668
    %v767 = vunpack.c.l.b16 %v669
    %v768 = vunpack.c.h.b16 %v669
    %v769 = vunpack.c.l.b16 %v670
    %v770 = vunpack.c.h.b16 %v670
    %v771 = vunpack.c.l.b16 %v671
    %v772 = vunpack.c.h.b16 %v671
    %v773 = vunpack.c.l.b16 %v672
    %v774 = vunpack.c.h.b16 %v672
    %v775 = vunpack.c.l.b16 %v673
    %v776 = vunpack.c.h.b16 %v673
    %v777 = vunpack.c.l.b16 %v674
    %v778 = vunpack.c.h.b16 %v674
    %v779 = vunpack.c.l.b16 %v675
    %v780 = vunpack.c.h.b16 %v675
    %v781 = vunpack.c.l.b16 %v676
    %v782 = vunpack.c.h.b16 %v676
    %v783 = vunpack.c.l.b16 %v677
    %v784 = vunpack.c.h.b16 %v677
    %v785 = vunpack.c.l.b16 %v678
    %v786 = vunpack.c.h.b16 %v678
    %v787 = vpack.c.b16 %v725, %v723
    %v788 = vpack.c.b16 %v726, %v724
    %v789 = vpack.c.b16 %v729, %v727
    %v790 = vpack.c.b16 %v730, %v728
    %v791 = vpack.c.b16 %v733, %v731
    %v792 = vpack.c.b16 %v734, %v732
    %v793 = vpack.c.b16 %v737, %v735
    %v794 = vpack.c.b16 %v738, %v736
    %v795 = vpack.c.b16 %v741, %v739
    %v796 = vpack.c.b16 %v742, %v740
    %v797 = vpack.c.b16 %v745, %v743
    %v798 = vpack.c.b16 %v746, %v744
    %v799 = vpack.c.b16 %v749, %v747
    %v800 = vpack.c.b16 %v750, %v748
    %v801 = vpack.c.b16 %v753, %v751
    %v802 = vpack.c.b16 %v754, %v752
    %v803 = vpack.c.b16 %v757, %v755
    %v804 = vpack.c.b16 %v758, %v756
    %v805 = vpack.c.b16 %v761, %v759
    %v806 = vpack.c.b16 %v762, %v760
    %v807 = vpack.c.b16 %v765, %v763
    %v808 = vpack.c.b16 %v766, %v764
    %v809 = vpack.c.b16 %v769, %v767
    %v810 = vpack.c.b16 %v770, %v768
    %v811 = vpack.c.b16 %v773, %v771
    %v812 = vpack.c.b16 %v774, %v772
    %v813 = vpack.c.b16 %v777, %v775
    %v814 = vpack.c.b16 %v778, %v776
    %v815 = vpack.c.b16 %v781, %v779
    %v816 = vpack.c.b16 %v782, %v780
    %v817 = vpack.c.b16 %v785, %v783
    %v818 = vpack.c.b16 %v786, %v784
    %851 = vmatprep.subr.bf16.mxu0 %v802
    %852 = vmatpush1.bf16.msra.mxu0 %v801
    %853 = vmatprep.subr.bf16.mxu0 %v800
    %854 = vmatpush1.bf16.msra.mxu0 %v799
    %855 = vmatprep.subr.bf16.mxu0 %v798
    %856 = vmatpush1.bf16.msra.mxu0 %v797
    %857 = vmatprep.subr.bf16.mxu0 %v796
    %858 = vmatpush1.bf16.msra.mxu0 %v795
    %859 = vmatprep.subr.bf16.mxu0 %v794
    %860 = vmatpush1.bf16.msra.mxu0 %v793
    %861 = vmatprep.subr.bf16.mxu0 %v792
    %862 = vmatpush1.bf16.msra.mxu0 %v791
    %863 = vmatprep.subr.bf16.mxu0 %v790
    %864 = vmatpush1.bf16.msra.mxu0 %v789
    %865 = vmatprep.subr.bf16.mxu0 %v788
    %866 = vmatpush1.bf16.msra.mxu0 %v787
    %867 = vmatprep.subr.bf16.mxu0 %v818
    %868 = vmatpush2.bf16.msra.mxu0 %v817
    %869 = vmatprep.subr.bf16.mxu0 %v816
    %870 = vmatpush2.bf16.msra.mxu0 %v815
    %871 = vmatprep.subr.bf16.mxu0 %v814
    %872 = vmatpush2.bf16.msra.mxu0 %v813
    %873 = vmatprep.subr.bf16.mxu0 %v812
    %874 = vmatpush2.bf16.msra.mxu0 %v811
    %875 = vmatprep.subr.bf16.mxu0 %v810
    %876 = vmatpush2.bf16.msra.mxu0 %v809
    %877 = vmatprep.subr.bf16.mxu0 %v808
    %878 = vmatpush2.bf16.msra.mxu0 %v807
    %879 = vmatprep.subr.bf16.mxu0 %v806
    %880 = vmatpush2.bf16.msra.mxu0 %v805
    %881 = vmatprep.subr.bf16.mxu0 %v804
    %882 = vmatpush2.bf16.msra.mxu0 %v803
    %883 = vmatprep.mubr.bf16.mxu0 %v646
    %884 = vmatmul.mubr.bf16.gmra.mxu0 %v645
    %v885 = vpop.f32.mrf.mxu0
    %v886 = vadd.f32 %v684, %v885
    %v887 = vpop.f32.mrf.mxu0
    %v888 = vadd.f32 %v688, %v887
    %v889 = vpop.f32.mrf.mxu0
    %v890 = vadd.f32 %v684, %v889
    %v891 = vpop.f32.mrf.mxu0
    %v892 = vadd.f32 %v688, %v891
    %893 = vdwg.mxu0
    %v894 = vmax.f32 %v886, 0.0
    %v895 = vmax.f32 %v888, 0.0
    %v896 = vmax.f32 %v890, 0.0
    %v897 = vmax.f32 %v892, 0.0
    %v898 = vtanh.pop %v894
    %v899 = vtanh.pop %v895
    %v900 = vtanh.pop %v896
    %v901 = vtanh.pop %v897
    %v902 = vpack.c.bf16 %v384, %v380
    %v903 = vpack.c.bf16 %v386, %v382
    %v904 = vld [vmem:[#allocation11] sm:$0xff]
    %v905 = vld [vmem:[#allocation11 + $0x8] sm:$0xff]
    %v906 = vld [vmem:[#allocation11 + $0x10] sm:$0xff]
    %v907 = vld [vmem:[#allocation11 + $0x18] sm:$0xff]
    %v908 = vld [vmem:[#allocation11 + $0x20] sm:$0xff]
    %v909 = vld [vmem:[#allocation11 + $0x28] sm:$0xff]
    %v910 = vld [vmem:[#allocation11 + $0x30] sm:$0xff]
    %v911 = vld [vmem:[#allocation11 + $0x38] sm:$0xff]
    %v912 = vld [vmem:[#allocation11 + $0x40] sm:$0xff]
    %v913 = vld [vmem:[#allocation11 + $0x48] sm:$0xff]
    %v914 = vld [vmem:[#allocation11 + $0x50] sm:$0xff]
    %v915 = vld [vmem:[#allocation11 + $0x58] sm:$0xff]
    %v916 = vld [vmem:[#allocation11 + $0x60] sm:$0xff]
    %v917 = vld [vmem:[#allocation11 + $0x68] sm:$0xff]
    %v918 = vld [vmem:[#allocation11 + $0x70] sm:$0xff]
    %v919 = vld [vmem:[#allocation11 + $0x78] sm:$0xff]
    %v920 = vld [vmem:[#allocation11 + $0x80] sm:$0xff]
    %v921 = vld [vmem:[#allocation11 + $0x88] sm:$0xff]
    %v922 = vld [vmem:[#allocation11 + $0x90] sm:$0xff]
    %v923 = vld [vmem:[#allocation11 + $0x98] sm:$0xff]
    %v924 = vld [vmem:[#allocation11 + $0xa0] sm:$0xff]
    %v925 = vld [vmem:[#allocation11 + $0xa8] sm:$0xff]
    %v926 = vld [vmem:[#allocation11 + $0xb0] sm:$0xff]
    %v927 = vld [vmem:[#allocation11 + $0xb8] sm:$0xff]
    %v928 = vld [vmem:[#allocation11 + $0xc0] sm:$0xff]
    %v929 = vld [vmem:[#allocation11 + $0xc8] sm:$0xff]
    %v930 = vld [vmem:[#allocation11 + $0xd0] sm:$0xff]
    %v931 = vld [vmem:[#allocation11 + $0xd8] sm:$0xff]
    %v932 = vld [vmem:[#allocation11 + $0xe0] sm:$0xff]
    %v933 = vld [vmem:[#allocation11 + $0xe8] sm:$0xff]
    %v934 = vld [vmem:[#allocation11 + $0xf0] sm:$0xff]
    %v935 = vld [vmem:[#allocation11 + $0xf8] sm:$0xff]
    %v936 = vld [vmem:[%s7] sm:$0x3]
    %v938 = vlaneseq
    %v939 = vshrl.u32 %v938, 7
    %v940 = vsub.s32 0, %v939
    %v941 = vrot.slane %v936, %v940
    %v942 = vlaneseq
    %v943 = vshrl.u32 %v942, 7
    %v944 = vsub.s32 1, %v943
    %v945 = vrot.slane %v936, %v944
    %v980 = vunpack.c.l.b16 %v904
    %v981 = vunpack.c.h.b16 %v904
    %v982 = vunpack.c.l.b16 %v905
    %v983 = vunpack.c.h.b16 %v905
    %v984 = vunpack.c.l.b16 %v906
    %v985 = vunpack.c.h.b16 %v906
    %v986 = vunpack.c.l.b16 %v907
    %v987 = vunpack.c.h.b16 %v907
    %v988 = vunpack.c.l.b16 %v908
    %v989 = vunpack.c.h.b16 %v908
    %v990 = vunpack.c.l.b16 %v909
    %v991 = vunpack.c.h.b16 %v909
    %v992 = vunpack.c.l.b16 %v910
    %v993 = vunpack.c.h.b16 %v910
    %v994 = vunpack.c.l.b16 %v911
    %v995 = vunpack.c.h.b16 %v911
    %v996 = vunpack.c.l.b16 %v912
    %v997 = vunpack.c.h.b16 %v912
    %v998 = vunpack.c.l.b16 %v913
    %v999 = vunpack.c.h.b16 %v913
    %v1000 = vunpack.c.l.b16 %v914
    %v1001 = vunpack.c.h.b16 %v914
    %v1002 = vunpack.c.l.b16 %v915
    %v1003 = vunpack.c.h.b16 %v915
    %v1004 = vunpack.c.l.b16 %v916
    %v1005 = vunpack.c.h.b16 %v916
    %v1006 = vunpack.c.l.b16 %v917
    %v1007 = vunpack.c.h.b16 %v917
    %v1008 = vunpack.c.l.b16 %v918
    %v1009 = vunpack.c.h.b16 %v918
    %v1010 = vunpack.c.l.b16 %v919
    %v1011 = vunpack.c.h.b16 %v919
    %v1012 = vunpack.c.l.b16 %v920
    %v1013 = vunpack.c.h.b16 %v920
    %v1014 = vunpack.c.l.b16 %v921
    %v1015 = vunpack.c.h.b16 %v921
    %v1016 = vunpack.c.l.b16 %v922
    %v1017 = vunpack.c.h.b16 %v922
    %v1018 = vunpack.c.l.b16 %v923
    %v1019 = vunpack.c.h.b16 %v923
    %v1020 = vunpack.c.l.b16 %v924
    %v1021 = vunpack.c.h.b16 %v924
    %v1022 = vunpack.c.l.b16 %v925
    %v1023 = vunpack.c.h.b16 %v925
    %v1024 = vunpack.c.l.b16 %v926
    %v1025 = vunpack.c.h.b16 %v926
    %v1026 = vunpack.c.l.b16 %v927
    %v1027 = vunpack.c.h.b16 %v927
    %v1028 = vunpack.c.l.b16 %v928
    %v1029 = vunpack.c.h.b16 %v928
    %v1030 = vunpack.c.l.b16 %v929
    %v1031 = vunpack.c.h.b16 %v929
    %v1032 = vunpack.c.l.b16 %v930
    %v1033 = vunpack.c.h.b16 %v930
    %v1034 = vunpack.c.l.b16 %v931
    %v1035 = vunpack.c.h.b16 %v931
    %v1036 = vunpack.c.l.b16 %v932
    %v1037 = vunpack.c.h.b16 %v932
    %v1038 = vunpack.c.l.b16 %v933
    %v1039 = vunpack.c.h.b16 %v933
    %v1040 = vunpack.c.l.b16 %v934
    %v1041 = vunpack.c.h.b16 %v934
    %v1042 = vunpack.c.l.b16 %v935
    %v1043 = vunpack.c.h.b16 %v935
    %v1044 = vpack.c.b16 %v982, %v980
    %v1045 = vpack.c.b16 %v983, %v981
    %v1046 = vpack.c.b16 %v986, %v984
    %v1047 = vpack.c.b16 %v987, %v985
    %v1048 = vpack.c.b16 %v990, %v988
    %v1049 = vpack.c.b16 %v991, %v989
    %v1050 = vpack.c.b16 %v994, %v992
    %v1051 = vpack.c.b16 %v995, %v993
    %v1052 = vpack.c.b16 %v998, %v996
    %v1053 = vpack.c.b16 %v999, %v997
    %v1054 = vpack.c.b16 %v1002, %v1000
    %v1055 = vpack.c.b16 %v1003, %v1001
    %v1056 = vpack.c.b16 %v1006, %v1004
    %v1057 = vpack.c.b16 %v1007, %v1005
    %v1058 = vpack.c.b16 %v1010, %v1008
    %v1059 = vpack.c.b16 %v1011, %v1009
    %v1060 = vpack.c.b16 %v1014, %v1012
    %v1061 = vpack.c.b16 %v1015, %v1013
    %v1062 = vpack.c.b16 %v1018, %v1016
    %v1063 = vpack.c.b16 %v1019, %v1017
    %v1064 = vpack.c.b16 %v1022, %v1020
    %v1065 = vpack.c.b16 %v1023, %v1021
    %v1066 = vpack.c.b16 %v1026, %v1024
    %v1067 = vpack.c.b16 %v1027, %v1025
    %v1068 = vpack.c.b16 %v1030, %v1028
    %v1069 = vpack.c.b16 %v1031, %v1029
    %v1070 = vpack.c.b16 %v1034, %v1032
    %v1071 = vpack.c.b16 %v1035, %v1033
    %v1072 = vpack.c.b16 %v1038, %v1036
    %v1073 = vpack.c.b16 %v1039, %v1037
    %v1074 = vpack.c.b16 %v1042, %v1040
    %v1075 = vpack.c.b16 %v1043, %v1041
    %1108 = vmatprep.subr.bf16.mxu0 %v1059
    %1109 = vmatpush1.bf16.msra.mxu0 %v1058
    %1110 = vmatprep.subr.bf16.mxu0 %v1057
    %1111 = vmatpush1.bf16.msra.mxu0 %v1056
    %1112 = vmatprep.subr.bf16.mxu0 %v1055
    %1113 = vmatpush1.bf16.msra.mxu0 %v1054
    %1114 = vmatprep.subr.bf16.mxu0 %v1053
    %1115 = vmatpush1.bf16.msra.mxu0 %v1052
    %1116 = vmatprep.subr.bf16.mxu0 %v1051
    %1117 = vmatpush1.bf16.msra.mxu0 %v1050
    %1118 = vmatprep.subr.bf16.mxu0 %v1049
    %1119 = vmatpush1.bf16.msra.mxu0 %v1048
    %1120 = vmatprep.subr.bf16.mxu0 %v1047
    %1121 = vmatpush1.bf16.msra.mxu0 %v1046
    %1122 = vmatprep.subr.bf16.mxu0 %v1045
    %1123 = vmatpush1.bf16.msra.mxu0 %v1044
    %1124 = vmatprep.subr.bf16.mxu0 %v1075
    %1125 = vmatpush2.bf16.msra.mxu0 %v1074
    %1126 = vmatprep.subr.bf16.mxu0 %v1073
    %1127 = vmatpush2.bf16.msra.mxu0 %v1072
    %1128 = vmatprep.subr.bf16.mxu0 %v1071
    %1129 = vmatpush2.bf16.msra.mxu0 %v1070
    %1130 = vmatprep.subr.bf16.mxu0 %v1069
    %1131 = vmatpush2.bf16.msra.mxu0 %v1068
    %1132 = vmatprep.subr.bf16.mxu0 %v1067
    %1133 = vmatpush2.bf16.msra.mxu0 %v1066
    %1134 = vmatprep.subr.bf16.mxu0 %v1065
    %1135 = vmatpush2.bf16.msra.mxu0 %v1064
    %1136 = vmatprep.subr.bf16.mxu0 %v1063
    %1137 = vmatpush2.bf16.msra.mxu0 %v1062
    %1138 = vmatprep.subr.bf16.mxu0 %v1061
    %1139 = vmatpush2.bf16.msra.mxu0 %v1060
    %1140 = vmatprep.mubr.bf16.mxu0 %v903
    %1141 = vmatmul.mubr.bf16.gmra.mxu0 %v902
    %v1142 = vpop.f32.mrf.mxu0
    %v1143 = vadd.f32 %v941, %v1142
    %v1144 = vpop.f32.mrf.mxu0
    %v1145 = vadd.f32 %v945, %v1144
    %v1146 = vpop.f32.mrf.mxu0
    %v1147 = vadd.f32 %v941, %v1146
    %v1148 = vpop.f32.mrf.mxu0
    %v1149 = vadd.f32 %v945, %v1148
    %1150 = vdwg.mxu0
    %v1151 = vld [vmem:[%s8] sm:$0x3]
    %v1153 = vlaneseq
    %v1154 = vshrl.u32 %v1153, 7
    %v1155 = vsub.s32 0, %v1154
    %v1156 = vrot.slane %v1151, %v1155
    %v1157 = vlaneseq
    %v1158 = vshrl.u32 %v1157, 7
    %v1159 = vsub.s32 1, %v1158
    %v1160 = vrot.slane %v1151, %v1159
    %v1163 = vmul.f32 %v1143, %v1156
    %v1164 = vmul.f32 %v1145, %v1160
    %v1165 = vmul.f32 %v1147, %v1156
    %v1166 = vmul.f32 %v1149, %v1160
    %v1167 = vadd.f32 %v1163, %v1164
    %1168 = vadd.xlane.f32.xlu0 %v1167
    %v1169 = vpop.xlane.xlu0 %1168
    %v1170 = vadd.f32 %v1165, %v1166
    %1171 = vadd.xlane.f32.xlu0 %v1170
    %v1172 = vpop.xlane.xlu0 %1171
    %v1173 = vld [vmem:[#allocation2] sm:$0x1]
    %v1175 = vlaneseq
    %v1176 = vshrl.u32 %v1175, 7
    %v1177 = vsub.s32 0, %v1176
    %v1178 = vrot.slane %v1173, %v1177
    %v1180 = vadd.f32 %v1169, %v1178
    %v1181 = vadd.f32 %v1172, %v1178
    %v1182 = vlaneseq
    %v1183 = vand.u32 %v1182, 127
    %v1184 = vadd.s32 %v1183, 128
    %vm1185 = vcmp.eq.s32.totalorder %v1183, 255
    %vm1186 = vcmp.eq.s32.totalorder %v1184, 255
    %1188 = vset.pattern.permute.xlu0 0
    %1189 = vperm.xlu0 %1188, %v1180
    %v1190 = vpop.permute.xlu0 %1189
    %1193 = vset.pattern.permute.xlu0 0
    %1194 = vperm.xlu0 %1193, %v1181
    %v1195 = vpop.permute.xlu0 %1194
    %v1197 = vsel %vm1185, %v1190, %v898
    %v1198 = vsel %vm1186, %v1190, %v899
    %v1199 = vsel %vm1185, %v1195, %v900
    %v1200 = vsel %vm1186, %v1195, %v901
    %v1201 = vpack.c.bf16 %v1199, %v1197
    %v1202 = vpack.c.bf16 %v1200, %v1198
    %v1205 = vunpack.c.l.b16 %v1201
    %v1206 = vunpack.c.l.b16 %v1202
    %v1207 = vunpack.c.h.b16 %v1201
    %v1208 = vunpack.c.h.b16 %v1202
    %v1209 = vpack.c.b16 %v1206, %v1205
    %v1210 = vpack.c.b16 %v1208, %v1207
    %1213 = vst [vmem:[#allocation12] sm:$0xff] %v1209
    %1214 = vst [vmem:[#allocation12 + $0x8] sm:$0xff] %v1210
    // Predicated region
    $region62: #{tpu_custom_call.1} parent=1 // pred_check
      _
    $region63: #{tpu_custom_call.1} parent=1 // pred_check_branch
      %1216 = sbr.rel (0) target = $region65
    $region64: #{tpu_custom_call.1} parent=1 // pred_region
      %s1218 = ssub.s32 256, 256
      %1219 = vsyncadd [#allocation5], %s1218
      %s1220 = sshll.u32 [#allocation12], 4
      %s1221 = int_to_ptr.vmem [resolvable:$true] %s1220
      %1226 = dma.vmem_to_hbm [thread:$0]  %s1221, 256, %s10, [#allocation5], 128, 128, 8
    $region65: #{tpu_custom_call.1} parent=1 // pred_fallthru
      _
    // Predicated region
    $region66: #{tpu_custom_call.1} parent=1 // pred_check
      _
    $region67: #{tpu_custom_call.1} parent=1 // pred_check_branch
      %1228 = sbr.rel (0) target = $region69
    $region68: #{tpu_custom_call.1} parent=1 // pred_region
      %1229 = dma.done [#allocation5], 256
    $region69: #{tpu_custom_call.1} parent=1 // pred_fallthru
      _
    %1230 = vsyncpa [#allocation4], 1
    %1231 = vsyncpa [#allocation7], 1
    %1232 = vsyncpa [#allocation10], 1
    %1233 = vsyncpa [#allocation5], 1

</llo_original>
